<compile_context>
chip_gen: v5e
topology: v5e:2x2
jax: 0.10.0
libtpu: 0.0.40
codegen_flags: <defaults>
</compile_context>

<pallas_src>
import functools

import jax
import jax.numpy as jnp
from jax.experimental import pallas as pl
from jax.experimental.pallas import tpu as pltpu


# --------------------------------------------------------------------------- #
# Kernel
# --------------------------------------------------------------------------- #
def _se_kernel(x_ref, w1t_ref, w2t_ref, o_ref, *, channels_last, mul_in_f32):
    # x_ref / o_ref : (TB, C, HW) if not channels_last else (TB, HW, C)
    # w1t_ref       : (C, Cr)  fc1.weight.T with the 1/HW pooling scale folded in
    # w2t_ref       : (Cr, C)  fc2.weight.T
    reduce_axis = 1 if channels_last else 2

    # Pass 1: global sum-pool over the spatial axis.  Widen inside the reduce so
    # only the (TB, C) accumulator is f32 (no full-slab f32 temporary).
    pooled = jnp.sum(x_ref[...], axis=reduce_axis, dtype=jnp.float32)  # (TB, C)

    # fc1 (pooling scale pre-folded) + ReLU: (TB, C) @ (C, Cr) -> (TB, Cr)
    h = jnp.dot(pooled, w1t_ref[...], preferred_element_type=jnp.float32)
    h = jnp.maximum(h, 0.0)

    # fc2 + sigmoid: (TB, Cr) @ (Cr, C) -> (TB, C).  exp/recip go to the EUP slot.
    s = jax.nn.sigmoid(jnp.dot(h, w2t_ref[...], preferred_element_type=jnp.float32))

    # Pass 2: re-read the tile from VMEM and scale (broadcast s over spatial).
    sb = s[:, None, :] if channels_last else s[:, :, None]
    if mul_in_f32:
        o_ref[...] = (x_ref[...].astype(jnp.float32) * sb).astype(o_ref.dtype)
    else:
        # bf16 VALU path (v6e / v7x): halves vld/vst + VALU work on the dominant pass.
        o_ref[...] = (x_ref[...] * sb.astype(x_ref.dtype)).astype(o_ref.dtype)


# --------------------------------------------------------------------------- #
# Hardware / tiling heuristics
# --------------------------------------------------------------------------- #
def _vmem_capacity_bytes():
    try:
        return int(pltpu.get_tpu_info().vmem_capacity_bytes)
    except Exception:
        return 64 << 20  # conservative default (v7x per-TC VMEM)


def _has_bf16_valu():
    # v5e (and older) have no bf16 VALU -> keep the f32 multiply path there.
    try:
        kind = jax.devices()[0].device_kind.lower()
    except Exception:
        return True
    for tag in ("v5 lite", "v5lite", "v5e", "v4", "v3", "v2"):
        if tag in kind:
            return False
    return True


def _choose_batch_tile(n, c, hw, itemsize, target_block_bytes):
    """Largest divisor of n whose block stays <= target bytes, keeping >= 2 grid
    steps when possible and preferring an even step count (balanced split across
    v7x's two TensorCores) unless that would shrink the block by more than 2x."""
    per_elem = max(1, c * hw * itemsize)
    tb_cap = max(1, target_block_bytes // per_elem)
    if n >= 2:
        tb_cap = min(tb_cap, max(1, n // 2))
    tb_cap = min(tb_cap, n)
    divisors = [tb for tb in range(int(tb_cap), 0, -1) if n % tb == 0]
    best = divisors[0]
    for tb in divisors:
        if (n // tb) % 2 == 0:
            return tb if 2 * tb >= best else best
    return best


# --------------------------------------------------------------------------- #
# Drivers
# --------------------------------------------------------------------------- #
def _se_forward(x3, w1, w2, channels_last):
    """Core driver.  x3 is (N, C, HW) or (N, HW, C).  Returns the scaled slab in
    the same layout, or None if the shape exceeds the VMEM budget (caller falls
    back to the pure-JAX path)."""
    N = x3.shape[0]
    if channels_last:
        HW, C = x3.shape[1], x3.shape[2]
    else:
        C, HW = x3.shape[1], x3.shape[2]
    Cr = w1.shape[0]
    itemsize = jnp.dtype(x3.dtype).itemsize

    # Generation-aware VMEM / block budgets.
    vmem_cap = _vmem_capacity_bytes()
    if vmem_cap >= (100 << 20):        # v5e / v6e: 128 MiB VMEM
        vmem_limit_cap = 96 << 20
        block_target = 16 << 20
    else:                              # v7x: 64 MiB per TensorCore
        vmem_limit_cap = 52 << 20
        block_target = 12 << 20

    per_elem_bytes = C * HW * itemsize
    # 2x in + 2x out double-buffered blocks + slack must fit under the limit.
    safe_block_cap = (vmem_limit_cap - (4 << 20)) // 4
    if per_elem_bytes > safe_block_cap:
        # TODO(synk): spatial-chunked two-pass kernel for very large (C, HW) slabs.
        return None

    TB = _choose_batch_tile(N, C, HW, itemsize, min(block_target, safe_block_cap))
    grid = (N // TB,)

    # Fold 1/HW into fc1's weight; pre-transpose both weights (tiny, trace-time)
    # so the in-kernel matmuls are plain row-major GEMMs.
    w1t = (w1.astype(jnp.float32) * (1.0 / HW)).T        # (C, Cr)
    w2t = w2.astype(jnp.float32).T                       # (Cr, C)

    block_bytes = TB * per_elem_bytes                    # in/out dtypes match here
    weight_bytes = 2 * C * Cr * 4
    vmem_bytes = 4 * block_bytes + 4 * weight_bytes + (2 << 20)
    vmem_limit = int(min(max(vmem_bytes, 32 << 20), vmem_limit_cap))

    mul_in_f32 = (x3.dtype == jnp.float32) or not _has_bf16_valu()

    block = (TB, HW, C) if channels_last else (TB, C, HW)
    kernel = functools.partial(
        _se_kernel, channels_last=channels_last, mul_in_f32=mul_in_f32
    )

    # Advisory: this custom call is HBM-bound (one read + one write of x).
    cost = pl.CostEstimate(
        flops=int(2 * N * C * HW + 4 * N * C * Cr),
        transcendentals=int(N * C),
        bytes_accessed=int(2 * N * per_elem_bytes + 2 * weight_bytes),
    )

    return pl.pallas_call(
        kernel,
        out_shape=jax.ShapeDtypeStruct(x3.shape, x3.dtype),
        grid_spec=pltpu.PrefetchScalarGridSpec(
            num_scalar_prefetch=0,
            grid=grid,
            in_specs=[
                pl.BlockSpec(block, lambda n: (n, 0, 0)),
                pl.BlockSpec((C, Cr), lambda n: (0, 0)),
                pl.BlockSpec((Cr, C), lambda n: (0, 0)),
            ],
            out_specs=pl.BlockSpec(block, lambda n: (n, 0, 0)),
        ),
        compiler_params=pltpu.CompilerParams(
            dimension_semantics=("parallel",),
            vmem_limit_bytes=vmem_limit,
        ),
        cost_estimate=cost,
    )(x3, w1t, w2t)


def se_module(x_nchw, w1, w2):
    """SEModule forward, NCHW input (matches the PyTorch module).

    x_nchw: (N, C, H, W)
    w1    : (C//r, C)  == fc1.weight[..., 0, 0]
    w2    : (C, C//r)  == fc2.weight[..., 0, 0]
    Returns (N, C, H, W) in x's dtype.
    """
    N, C, H, W = x_nchw.shape
    HW = H * W
    # Layout choice: keep the channel-major (N, C, HW) view when the spatial axis is
    # already lane-dense; for real SE shapes (7x7..56x56 spatial, C a multiple of 128)
    # present a channels-last slab so loads/stores are lane-dense in C.  If the
    # producer already has NHWC activations, use se_module_nhwc to skip the transpose.
    use_channels_last = (HW % 128 != 0) and (C % 128 == 0)
    if use_channels_last:
        x3 = jnp.transpose(x_nchw.reshape(N, C, HW), (0, 2, 1))   # (N, HW, C)
        out = _se_forward(x3, w1, w2, channels_last=True)
        if out is None:
            return se_module_ref(x_nchw, w1, w2)
        return jnp.transpose(out, (0, 2, 1)).reshape(N, C, H, W)
    x3 = x_nchw.reshape(N, C, HW)
    out = _se_forward(x3, w1, w2, channels_last=False)
    if out is None:
        return se_module_ref(x_nchw, w1, w2)
    return out.reshape(N, C, H, W)


def se_module_nhwc(x_nhwc, w1, w2):
    """SEModule forward for producer-side channels-last (N, H, W, C) activations:
    fully lane-dense in C with no wrapper transposes."""
    N, H, W, C = x_nhwc.shape
    x3 = x_nhwc.reshape(N, H * W, C)
    out = _se_forward(x3, w1, w2, channels_last=True)
    if out is None:
        x_nchw = jnp.transpose(x_nhwc, (0, 3, 1, 2))
        return jnp.transpose(se_module_ref(x_nchw, w1, w2), (0, 2, 3, 1))
    return out.reshape(N, H, W, C)


def se_module_ref(x, w1, w2):
    """Pure-JAX reference matching the PyTorch forward (NCHW)."""
    xf = x.astype(jnp.float32)
    pooled = jnp.mean(xf, axis=(2, 3))                             # (N, C)
    h = jnp.maximum(pooled @ w1.astype(jnp.float32).T, 0.0)        # (N, Cr)
    s = jax.nn.sigmoid(h @ w2.astype(jnp.float32).T)               # (N, C)
    return (xf * s[:, :, None, None]).astype(x.dtype)


# --------------------------------------------------------------------------- #
# Self-test
# --------------------------------------------------------------------------- #
if __name__ == "__main__":
    key = jax.random.PRNGKey(0)

    # Test 1: channel-major path (HW = 256, lane-dense spatial), f32.
    N, C, H, W, r = 2, 32, 16, 16, 4
    Cr = C // r
    kx, k1, k2, key = jax.random.split(key, 4)
    x = jax.random.normal(kx, (N, C, H, W), dtype=jnp.float32)
    w1 = jax.random.normal(k1, (Cr, C), dtype=jnp.float32) * 0.1   # fc1.weight[..., 0, 0]
    w2 = jax.random.normal(k2, (C, Cr), dtype=jnp.float32) * 0.1   # fc2.weight[..., 0, 0]
    out = se_module(x, w1, w2)
    jax.block_until_ready(out)
    ref = se_module_ref(x, w1, w2)
    assert out.shape == (N, C, H, W)
    assert jnp.allclose(out, ref, atol=1e-5, rtol=1e-5), "mismatch vs reference (f32)"

    # Test 2: channels-last path (HW = 49 not lane-dense, C = 128 is), bf16.
    N2, C2, H2, W2, r2 = 2, 128, 7, 7, 8
    Cr2 = C2 // r2
    kx2, k12, k22, key = jax.random.split(key, 4)
    x2 = jax.random.normal(kx2, (N2, C2, H2, W2), dtype=jnp.bfloat16)
    w12 = jax.random.normal(k12, (Cr2, C2), dtype=jnp.float32) * 0.05
    w22 = jax.random.normal(k22, (C2, Cr2), dtype=jnp.float32) * 0.05
    out2 = se_module(x2, w12, w22)
    jax.block_until_ready(out2)
    ref2 = se_module_ref(x2, w12, w22)
    assert out2.shape == (N2, C2, H2, W2)
    assert jnp.allclose(out2.astype(jnp.float32), ref2.astype(jnp.float32),
                        atol=3e-2, rtol=3e-2), "mismatch vs reference (bf16 / channels-last)"

    # Test 3: producer-side NHWC entry point (no wrapper transposes).
    x2_nhwc = jnp.transpose(x2, (0, 2, 3, 1))
    out3 = se_module_nhwc(x2_nhwc, w12, w22)
    jax.block_until_ready(out3)
    ref3 = jnp.transpose(ref2, (0, 2, 3, 1))
    assert jnp.allclose(out3.astype(jnp.float32), ref3.astype(jnp.float32),
                        atol=3e-2, rtol=3e-2), "mismatch vs reference (NHWC)"

    print("KERNEL_OK")
</pallas_src>

<mosaic_0001>
module attributes {stable_mosaic.version = 11 : i64} {
  func.func @_se_kernel(%arg0: i32, %arg1: memref<1x32x256xf32, #tpu.memory_space<vmem>>, %arg2: memref<32x8xf32, #tpu.memory_space<vmem>>, %arg3: memref<8x32xf32, #tpu.memory_space<vmem>>, %arg4: memref<1x32x256xf32, #tpu.memory_space<vmem>>) attributes {dimension_semantics = [#tpu.dimension_semantics<parallel>], iteration_bounds = array<i64: 2>, scalar_prefetch = 0 : i64, scratch_operands = 0 : i64, tpu.core_type = #tpu.core_type<tc>, window_params = [{transform_indices = @transform_0, window_bounds = array<i64: 1, 32, 256>}, {pipeline_mode = #tpu.pipeline_mode<synchronous>, transform_indices = @transform_1, window_bounds = array<i64: 32, 8>}, {pipeline_mode = #tpu.pipeline_mode<synchronous>, transform_indices = @transform_2, window_bounds = array<i64: 8, 32>}, {transform_indices = @transform_3, window_bounds = array<i64: 1, 32, 256>}]} {
    %c0 = arith.constant 0 : index
    %c0_0 = arith.constant 0 : index
    %c0_1 = arith.constant 0 : index
    %0 = vector.load %arg1[%c0, %c0_0, %c0_1] : memref<1x32x256xf32, #tpu.memory_space<vmem>>, vector<1x32x256xf32>
    %cst = arith.constant dense<0.000000e+00> : vector<1x32xf32>
    %1 = vector.multi_reduction <add>, %0, %cst [2] : vector<1x32x256xf32> to vector<1x32xf32>
    %c0_2 = arith.constant 0 : index
    %c0_3 = arith.constant 0 : index
    %2 = vector.load %arg2[%c0_2, %c0_3] : memref<32x8xf32, #tpu.memory_space<vmem>>, vector<32x8xf32>
    %cst_4 = arith.constant dense<0.000000e+00> : vector<1x8xf32>
    %3 = tpu.matmul %1, %2, %cst_4 {dimension_numbers = #tpu.dot_dimension_numbers<[1], [0], [0], [1], [0, 0, 1, 1], [], []>} : vector<1x32xf32>, vector<32x8xf32>, vector<1x8xf32> -> vector<1x8xf32>
    %cst_5 = arith.constant 0.000000e+00 : f32
    %4 = vector.broadcast %cst_5 : f32 to vector<1x8xf32>
    %5 = arith.maximumf %3, %4 : vector<1x8xf32>
    %c0_6 = arith.constant 0 : index
    %c0_7 = arith.constant 0 : index
    %6 = vector.load %arg3[%c0_6, %c0_7] : memref<8x32xf32, #tpu.memory_space<vmem>>, vector<8x32xf32>
    %cst_8 = arith.constant dense<0.000000e+00> : vector<1x32xf32>
    %7 = tpu.matmul %5, %6, %cst_8 {dimension_numbers = #tpu.dot_dimension_numbers<[1], [0], [0], [1], [0, 0, 1, 1], [], []>} : vector<1x8xf32>, vector<8x32xf32>, vector<1x32xf32> -> vector<1x32xf32>
    %8 = arith.negf %7 : vector<1x32xf32>
    %9 = math.exp %8 : vector<1x32xf32>
    %cst_9 = arith.constant 1.000000e+00 : f32
    %10 = vector.broadcast %cst_9 : f32 to vector<1x32xf32>
    %11 = arith.addf %10, %9 : vector<1x32xf32>
    %12 = arith.divf %10, %11 : vector<1x32xf32>
    %13 = vector.shape_cast %12 : vector<1x32xf32> to vector<1x32x1xf32>
    %c0_10 = arith.constant 0 : index
    %c0_11 = arith.constant 0 : index
    %c0_12 = arith.constant 0 : index
    %14 = vector.load %arg1[%c0_10, %c0_11, %c0_12] : memref<1x32x256xf32, #tpu.memory_space<vmem>>, vector<1x32x256xf32>
    %15 = vector.broadcast %13 : vector<1x32x1xf32> to vector<1x32x256xf32>
    %16 = arith.mulf %14, %15 : vector<1x32x256xf32>
    %c0_13 = arith.constant 0 : index
    %c0_14 = arith.constant 0 : index
    %c0_15 = arith.constant 0 : index
    %17 = vector.load %arg4[%c0_13, %c0_14, %c0_15] : memref<1x32x256xf32, #tpu.memory_space<vmem>>, vector<1x32x256xf32>
    tpu.vector_store %arg4[%c0_13, %c0_14, %c0_15], %16 {strides = array<i32>} : memref<1x32x256xf32, #tpu.memory_space<vmem>>, vector<1x32x256xf32>,
    return
  }
  func.func @transform_0(%arg0: i32) -> (i32, i32, i32) {
    %c0_i32 = arith.constant 0 : i32
    %c0_i32_0 = arith.constant 0 : i32
    %c0_i32_1 = arith.constant 0 : i32
    return %arg0, %c0_i32, %c0_i32_0 : i32, i32, i32
  }
  func.func @transform_1(%arg0: i32) -> (i32, i32) {
    %c0_i32 = arith.constant 0 : i32
    %c0_i32_0 = arith.constant 0 : i32
    %c0_i32_1 = arith.constant 0 : i32
    return %c0_i32, %c0_i32_0 : i32, i32
  }
  func.func @transform_2(%arg0: i32) -> (i32, i32) {
    %c0_i32 = arith.constant 0 : i32
    %c0_i32_0 = arith.constant 0 : i32
    %c0_i32_1 = arith.constant 0 : i32
    return %c0_i32, %c0_i32_0 : i32, i32
  }
  func.func @transform_3(%arg0: i32) -> (i32, i32, i32) {
    %c0_i32 = arith.constant 0 : i32
    %c0_i32_0 = arith.constant 0 : i32
    %c0_i32_1 = arith.constant 0 : i32
    return %arg0, %c0_i32, %c0_i32_0 : i32, i32, i32
  }
}

</mosaic_0001>

<llo_original>
// kernel: tpu_custom_call.1
$region0: #{tpu_custom_call.1}
  #allocation0 [shape = 'u32[]', space=smem, size = 0x4, offset = 0x4, fixed_abs, tag = 'smem constant byte address 0x4 - core index']
  #allocation1 [shape = 'u32[72,128]{1,0:T(1,128)}', space=vmem, size = 0x9000, scoped, tag = 'internal scratch']
  %s0 = inlined_call_operand.hbm [shape: f32[2,32,256], index: 0, kind: input, shape index: {}]
  %s1 = inlined_call_operand.vmem [shape: f32[32,8], index: 1, kind: input, shape index: {}]
  %s2 = inlined_call_operand.vmem [shape: f32[8,32], index: 2, kind: input, shape index: {}]
  %s3 = inlined_call_operand.hbm [shape: f32[2,32,256], index: 3, kind: output, shape index: {}]
  %s4 = sld [smem:[#allocation0]]
  $region49: #{tpu_custom_call.1} parent=0
    _
  %s6 = ssub.s32 1, %s4
  %s7 = scalar_select 0, %s6, %s4
  $region1: #{tpu_custom_call.1} parent=0
    #allocation2 [shape = 'u8[65536]{0}', space=vmem, size = 0x10000, scoped, tag = 'input window, operand 0']
    #allocation3 [shape = 's32[2]{0}', space=sflag, size = 0x8, scoped, tag = 'scoped memory for tpu_custom_call.1']
    #allocation4 [shape = 's32[2]{0}', space=sflag, size = 0x8, scoped, tag = 'scoped memory for tpu_custom_call.1']
    #allocation5 [shape = 'u8[65536]{0}', space=vmem, size = 0x10000, scoped, tag = 'output window, operand 0']
    %8 = vsyncpa [#allocation3], 0
    %s9 = scalar_lea.sflag [#allocation3], 1
    %10 = vsyncpa %s9, 0
    %11 = vsyncpa [#allocation4], 0
    %s12 = scalar_lea.sflag [#allocation4], 1
    %13 = vsyncpa %s12, 0
    loop: start=0, step=1, limit=4
    $region2: #{tpu_custom_call.1} parent=1 // loop_pre_header
      _
    $region3: #{tpu_custom_call.1} parent=1 // loop_header
      %s15 = sphi 0, %s19
      %p16 = scmp.ge.s32.totalorder %s15, 4
      %s25 = sphi 0, %s27
      %s28 = sphi 0, %s25
      %s29 = sphi 0, %s28
      %s45 = sphi 0, %s29
      %s49 = sphi 0, %s49
      %s51 = sphi 0, %s49
      %s52 = sphi 0, %s51
      %s66 = sphi 0, %s52
      %s70 = sphi 0, %s70
      %s72 = sphi 0, %s70
      %s73 = sphi 0, %s72
      %s87 = sphi 0, %s73
      %s93 = sphi 0, %s95
      %s96 = sphi 0, %s93
      %s97 = sphi 0, %s96
      %s113 = sphi 0, %s97
    $region4: #{tpu_custom_call.1} parent=1 // loop_header_branch
      %18 = sbr.rel (%p16) target = $region8
    $region5: #{tpu_custom_call.1} parent=1 // loop_body
      %s20 = ssub.s32 %s15, 1
      %s21 = ssub.s32 %s15, 2
      %s22 = sadd.s32 %s15, 1
      %s23 = ssub.s32 %s15, %s22
      %p24 = scmp.eq.s32.totalorder %s23, 0
      %s26 = sadd.s32 %s25, 1
      %s27 = scalar_select %p24, %s25, %s26
      %p30 = pneg %p24
      %p31 = scmp.eq.s32.totalorder %s15, 1
      %p32 = por %p30, %p31
      %p33 = scmp.ne.s32.totalorder %s25, %s28
      %p34 = scmp.eq.s32.totalorder %s15, 0
      %p35 = por %p33, %p34
      %p36 = scmp.ne.s32.totalorder %s25, %s28
      %p37 = scmp.eq.s32.totalorder %s20, 1
      %p38 = por %p36, %p37
      %p39 = scmp.ne.s32.totalorder %s28, %s29
      %p40 = scmp.eq.s32.totalorder %s20, 0
      %p41 = por %p39, %p40
      %p42 = scmp.ne.s32.totalorder %s28, %s29
      %p43 = scmp.eq.s32.totalorder %s21, 1
      %p44 = por %p42, %p43
      %p46 = scmp.ne.s32.totalorder %s29, %s45
      %p47 = scmp.eq.s32.totalorder %s21, 0
      %p48 = por %p46, %p47
      %s50 = sadd.s32 %s49, 1
      %p53 = scmp.eq.s32.totalorder %s15, 1
      %p54 = scmp.ne.s32.totalorder %s49, %s51
      %p55 = scmp.eq.s32.totalorder %s15, 0
      %p56 = por %p54, %p55
      %p57 = scmp.ne.s32.totalorder %s49, %s51
      %p58 = scmp.eq.s32.totalorder %s20, 1
      %p59 = por %p57, %p58
      %p60 = scmp.ne.s32.totalorder %s51, %s52
      %p61 = scmp.eq.s32.totalorder %s20, 0
      %p62 = por %p60, %p61
      %p63 = scmp.ne.s32.totalorder %s51, %s52
      %p64 = scmp.eq.s32.totalorder %s21, 1
      %p65 = por %p63, %p64
      %p67 = scmp.ne.s32.totalorder %s52, %s66
      %p68 = scmp.eq.s32.totalorder %s21, 0
      %p69 = por %p67, %p68
      %s71 = sadd.s32 %s70, 1
      %p74 = scmp.eq.s32.totalorder %s15, 1
      %p75 = scmp.ne.s32.totalorder %s70, %s72
      %p76 = scmp.eq.s32.totalorder %s15, 0
      %p77 = por %p75, %p76
      %p78 = scmp.ne.s32.totalorder %s70, %s72
      %p79 = scmp.eq.s32.totalorder %s20, 1
      %p80 = por %p78, %p79
      %p81 = scmp.ne.s32.totalorder %s72, %s73
      %p82 = scmp.eq.s32.totalorder %s20, 0
      %p83 = por %p81, %p82
      %p84 = scmp.ne.s32.totalorder %s72, %s73
      %p85 = scmp.eq.s32.totalorder %s21, 1
      %p86 = por %p84, %p85
      %p88 = scmp.ne.s32.totalorder %s73, %s87
      %p89 = scmp.eq.s32.totalorder %s21, 0
      %p90 = por %p88, %p89
      %s91 = ssub.s32 %s15, %s22
      %p92 = scmp.eq.s32.totalorder %s91, 0
      %s94 = sadd.s32 %s93, 1
      %s95 = scalar_select %p92, %s93, %s94
      %p98 = pneg %p92
      %p99 = scmp.eq.s32.totalorder %s15, 1
      %p100 = por %p98, %p99
      %p101 = scmp.ne.s32.totalorder %s93, %s96
      %p102 = scmp.eq.s32.totalorder %s15, 0
      %p103 = por %p101, %p102
      %p104 = scmp.ne.s32.totalorder %s93, %s96
      %p105 = scmp.eq.s32.totalorder %s20, 1
      %p106 = por %p104, %p105
      %p107 = scmp.ne.s32.totalorder %s96, %s97
      %p108 = scmp.eq.s32.totalorder %s20, 0
      %p109 = por %p107, %p108
      %p110 = scmp.ne.s32.totalorder %s96, %s97
      %p111 = scmp.eq.s32.totalorder %s21, 1
      %p112 = por %p110, %p111
      %p114 = scmp.ne.s32.totalorder %s97, %s113
      %p115 = scmp.eq.s32.totalorder %s21, 0
      %p116 = por %p114, %p115
      %p117 = scmp.le.s32.totalorder 1, %s15
      %p118 = scmp.lt.s32.totalorder %s15, 3
      %p119 = pnand %p117, %p118
      %p120 = pneg %p119
      // Predicated region
      $region9: #{tpu_custom_call.1} parent=5 // pred_check
        _
      $region10: #{tpu_custom_call.1} parent=5 // pred_check_branch
        %122 = sbr.rel (%p119) target = $region12
      $region11: #{tpu_custom_call.1} parent=5 // pred_region
        %s123 = ssub.s32 %s15, 1
        // Predicated region
        $region13: #{tpu_custom_call.1} parent=11 // pred_check
          %p124 = pneg %p62
        $region14: #{tpu_custom_call.1} parent=11 // pred_check_branch
          %126 = sbr.rel (%p124) target = $region16
        $region15: #{tpu_custom_call.1} parent=11 // pred_region
          _
        $region16: #{tpu_custom_call.1} parent=11 // pred_fallthru
          _
        // Predicated region
        $region17: #{tpu_custom_call.1} parent=11 // pred_check
          %p127 = pneg %p83
        $region18: #{tpu_custom_call.1} parent=11 // pred_check_branch
          %129 = sbr.rel (%p127) target = $region20
        $region19: #{tpu_custom_call.1} parent=11 // pred_region
          _
        $region20: #{tpu_custom_call.1} parent=11 // pred_fallthru
          _
      $region12: #{tpu_custom_call.1} parent=5 // pred_fallthru
        _
      %p130 = scmp.lt.s32.totalorder %s15, 2
      // Predicated region
      $region21: #{tpu_custom_call.1} parent=5 // pred_check
        %p131 = pneg %p130
      $region22: #{tpu_custom_call.1} parent=5 // pred_check_branch
        %133 = sbr.rel (%p131) target = $region24
      $region23: #{tpu_custom_call.1} parent=5 // pred_region
        // Predicated region
        $region25: #{tpu_custom_call.1} parent=23 // pred_check
          %p134 = pneg %p35
        $region26: #{tpu_custom_call.1} parent=23 // pred_check_branch
          %136 = sbr.rel (%p134) target = $region28
        $region27: #{tpu_custom_call.1} parent=23 // pred_region
          %s137 = sand.u32 %s25, 1
          %s138 = scalar_lea.sflag [#allocation3], %s137
          %s139 = sand.u32 %s25, 1
          %s140 = smul.addr %s139, 64
          %s141 = scalar_lea.vmem [#allocation2], %s140
          %143 = vsyncadd %s138, 0
          %s144 = smul.addr %s15, 8
          %s145 = smul.addr %s144, 8
          %s146 = scalar_lea.hbm %s0, %s145
          %s147 = sshll.u32 %s146, 4
          %s148 = int_to_ptr.hbm [resolvable:$true] %s147
          %s149 = sshll.u32 %s141, 4
          %s150 = int_to_ptr.vmem [resolvable:$true] %s149
          %155 = dma.hbm_to_vmem [thread:$0]  %s148, 1024, %s150, %s138, 256, 256, 16
        $region28: #{tpu_custom_call.1} parent=23 // pred_fallthru
          _
      $region24: #{tpu_custom_call.1} parent=5 // pred_fallthru
        _
      %p156 = scmp.le.s32.totalorder 1, %s15
      %p157 = scmp.lt.s32.totalorder %s15, 3
      %p158 = pnand %p156, %p157
      %p159 = pneg %p158
      // Predicated region
      $region29: #{tpu_custom_call.1} parent=5 // pred_check
        _
      $region30: #{tpu_custom_call.1} parent=5 // pred_check_branch
        %161 = sbr.rel (%p158) target = $region32
      $region31: #{tpu_custom_call.1} parent=5 // pred_region
        %s162 = ssub.s32 %s15, 1
        %s163 = sand.u32 %s28, 1
        %s164 = scalar_lea.sflag [#allocation3], %s163
        %s165 = sand.u32 %s28, 1
        %s166 = smul.addr %s165, 64
        %s167 = scalar_lea.vmem [#allocation2], %s166
        // Predicated region
        $region33: #{tpu_custom_call.1} parent=31 // pred_check
          %p168 = pneg %p41
        $region34: #{tpu_custom_call.1} parent=31 // pred_check_branch
          %170 = sbr.rel (%p168) target = $region36
        $region35: #{tpu_custom_call.1} parent=31 // pred_region
          %172 = dma.done %s164, 1024
        $region36: #{tpu_custom_call.1} parent=31 // pred_fallthru
          _
        %s173 = sand.u32 %s28, 1
        %s174 = scalar_lea.sflag [#allocation3], %s173
        %s175 = sand.u32 %s28, 1
        %s176 = smul.addr %s175, 64
        %s177 = scalar_lea.vmem [#allocation2], %s176
        %p178 = pneg %p41
        %p179 = pneg %p38
        %p180 = pneg %p62
        %p181 = pneg %p59
        %p182 = pneg %p83
        %p183 = pneg %p80
        %p184 = pneg %p109
        %p185 = pneg %p106
        %s186 = sand.u32 %s96, 1
        %s187 = scalar_lea.sflag [#allocation4], %s186
        %s188 = sand.u32 %s96, 1
        %s189 = smul.addr %s188, 64
        %s190 = scalar_lea.vmem [#allocation5], %s189
        %v191 = vld [vmem:[%s167] sm:$0xff]
        %v192 = vld [vmem:[%s167 + $0x8] sm:$0xff]
        %v193 = vld [vmem:[%s167 + $0x10] sm:$0xff]
        %v194 = vld [vmem:[%s167 + $0x18] sm:$0xff]
        %v195 = vld [vmem:[%s167 + $0x20] sm:$0xff]
        %v196 = vld [vmem:[%s167 + $0x28] sm:$0xff]
        %v197 = vld [vmem:[%s167 + $0x30] sm:$0xff]
        %v198 = vld [vmem:[%s167 + $0x38] sm:$0xff]
        %v199 = vadd.f32 %v191, %v192
        %200 = vadd.xlane.f32.xlu0 %v199
        %v201 = vpop.xlane.xlu0 %200
        %v202 = vadd.f32 %v193, %v194
        %203 = vadd.xlane.f32.xlu0 %v202
        %v204 = vpop.xlane.xlu0 %203
        %v205 = vadd.f32 %v195, %v196
        %206 = vadd.xlane.f32.xlu0 %v205
        %v207 = vpop.xlane.xlu0 %206
        %v208 = vadd.f32 %v197, %v198
        %209 = vadd.xlane.f32.xlu0 %v208
        %v210 = vpop.xlane.xlu0 %209
        %v211 = vld [vmem:[%s1] sm:$0xff]
        %v212 = vld [vmem:[%s1 + $0x8] sm:$0xff]
        %v213 = vld [vmem:[%s1 + $0x10] sm:$0xff]
        %v214 = vld [vmem:[%s1 + $0x18] sm:$0xff]
        %v219 = vlaneseq
        %v220 = vand.u32 %v219, 127
        %v221 = vperm.slane %v201, %v220
        %v222 = vadd.s32 %v220, 4294967288
        %v223 = vperm.slane %v204, %v222
        %vm224 = vcmask 130112
        %v225 = vsel %vm224, %v223, %v221
        %v226 = vadd.s32 %v220, 4294967280
        %v227 = vperm.slane %v207, %v226
        %vm228 = vcmask 195712
        %v229 = vsel %vm228, %v227, %v225
        %v230 = vadd.s32 %v220, 4294967272
        %v231 = vperm.slane %v210, %v230
        %vm232 = vcmask 261312
        %v233 = vsel %vm232, %v231, %v229
        %vm234 = vcmask 261120
        %v235 = vsel %vm234, %v233, 0
        %237 = vmatpush.msra.mxu0 0.0
        %238 = vmatpush.msra.mxu0 0.0
        %239 = vmatpush.msra.mxu0 0.0
        %240 = vmatpush.msra.mxu0 0.0
        %241 = vmatpush.msra.mxu0 0.0
        %242 = vmatpush.msra.mxu0 0.0
        %243 = vmatpush.msra.mxu0 0.0
        %244 = vmatpush.msra.mxu0 0.0
        %245 = vmatpush.msra.mxu0 0.0
        %246 = vmatpush.msra.mxu0 0.0
        %247 = vmatpush.msra.mxu0 0.0
        %248 = vmatpush.msra.mxu0 0.0
        %249 = vmatpush.msra.mxu0 %v214
        %250 = vmatpush.msra.mxu0 %v213
        %251 = vmatpush.msra.mxu0 %v212
        %252 = vmatpush.msra.mxu0 %v211
        %253 = vmatmul.f32.gmra.mxu0 %v235
        %v254 = vpop.f32.mrf.mxu0
        %v255 = vadd.f32 0.0, %v254
        %256 = vdwg.mxu0
        %v257 = vmax.f32 %v255, 0.0
        %v258 = vld [vmem:[%s2] sm:$0xff]
        %vm259 = vcmask 64512
        %v261 = vsel %vm259, %v257, 0
        %263 = vmatpush.msra.mxu0 0.0
        %264 = vmatpush.msra.mxu0 0.0
        %265 = vmatpush.msra.mxu0 0.0
        %266 = vmatpush.msra.mxu0 0.0
        %267 = vmatpush.msra.mxu0 0.0
        %268 = vmatpush.msra.mxu0 0.0
        %269 = vmatpush.msra.mxu0 0.0
        %270 = vmatpush.msra.mxu0 0.0
        %271 = vmatpush.msra.mxu0 0.0
        %272 = vmatpush.msra.mxu0 0.0
        %273 = vmatpush.msra.mxu0 0.0
        %274 = vmatpush.msra.mxu0 0.0
        %275 = vmatpush.msra.mxu0 0.0
        %276 = vmatpush.msra.mxu0 0.0
        %277 = vmatpush.msra.mxu0 0.0
        %278 = vmatpush.msra.mxu0 %v258
        %279 = vmatmul.f32.gmra.mxu0 %v261
        %v280 = vpop.f32.mrf.mxu0
        %v281 = vadd.f32 0.0, %v280
        %282 = vdwg.mxu0
        %v283 = vxor.u32 %v281, 2147483648
        %v284 = vmul.f32 %v283, 1.442695
        %v285 = vpow.pop %v284
        %v286 = vadd.f32 %v285, 1.0
        %v287 = vrcp.pop %v286
        %v288 = vmul.f32 %v286, %v287
        %v289 = vsub.f32 1.0, %v288
        %v290 = vmul.f32 %v287, %v289
        %v291 = vadd.f32 %v287, %v290
        %vm292 = vweird.f32 %v286
        %vm293 = vweird.f32 %v287
        %vm294 = vmor %vm292, %vm293
        %v295 = vsel %vm294, %v287, %v291
        %v296 = vand.u32 2147483647, %v286
        %vm297 = vcmp.eq.f32.partialorder %v296, 8.507059e+37
        %v298 = vand.u32 %v286, 2147483648
        %v299 = vor.u32 1.1754944e-38, %v298
        %v300 = vsel %vm297, %v299, %v295
        %v301 = vmul.f32 1.0, %v300
        %v302 = vperm.slane %v301, 0
        %v303 = vlaneseq
        %v304 = vshrl.u32 %v303, 7
        %306 = vset.pattern.permute.xlu0 %v304
        %307 = vperm.xlu0 %306, %v302
        %v308 = vpop.permute.xlu0 %307
        %v309 = vlaneseq
        %v310 = vshrl.u32 %v309, 7
        %v311 = vadd.s32 %v310, 8
        %312 = vset.pattern.permute.xlu0 %v311
        %313 = vperm.xlu0 %312, %v302
        %v314 = vpop.permute.xlu0 %313
        %v315 = vlaneseq
        %v316 = vshrl.u32 %v315, 7
        %v317 = vadd.s32 %v316, 16
        %318 = vset.pattern.permute.xlu0 %v317
        %319 = vperm.xlu0 %318, %v302
        %v320 = vpop.permute.xlu0 %319
        %v321 = vlaneseq
        %v322 = vshrl.u32 %v321, 7
        %v323 = vadd.s32 %v322, 24
        %324 = vset.pattern.permute.xlu0 %v323
        %325 = vperm.xlu0 %324, %v302
        %v326 = vpop.permute.xlu0 %325
        %v327 = vmul.f32 %v191, %v308
        %v328 = vmul.f32 %v192, %v308
        %v329 = vmul.f32 %v193, %v314
        %v330 = vmul.f32 %v194, %v314
        %v331 = vmul.f32 %v195, %v320
        %v332 = vmul.f32 %v196, %v320
        %v333 = vmul.f32 %v197, %v326
        %v334 = vmul.f32 %v198, %v326
        %335 = vst [vmem:[%s190] sm:$0xff] %v327
        %336 = vst [vmem:[%s190 + $0x8] sm:$0xff] %v328
        %337 = vst [vmem:[%s190 + $0x10] sm:$0xff] %v329
        %338 = vst [vmem:[%s190 + $0x18] sm:$0xff] %v330
        %339 = vst [vmem:[%s190 + $0x20] sm:$0xff] %v331
        %340 = vst [vmem:[%s190 + $0x28] sm:$0xff] %v332
        %341 = vst [vmem:[%s190 + $0x30] sm:$0xff] %v333
        %342 = vst [vmem:[%s190 + $0x38] sm:$0xff] %v334
        %s343 = sand.u32 %s96, 1
        %s344 = scalar_lea.sflag [#allocation4], %s343
        %s345 = sand.u32 %s96, 1
        %s346 = smul.addr %s345, 64
        %s347 = scalar_lea.vmem [#allocation5], %s346
        // Predicated region
        $region37: #{tpu_custom_call.1} parent=31 // pred_check
          %p348 = pneg %p106
        $region38: #{tpu_custom_call.1} parent=31 // pred_check_branch
          %350 = sbr.rel (%p348) target = $region40
        $region39: #{tpu_custom_call.1} parent=31 // pred_region
          %352 = vsyncadd %s344, 0
          %s353 = smul.addr %s20, 8
          %s354 = smul.addr %s353, 8
          %s355 = scalar_lea.hbm %s3, %s354
          %s356 = sshll.u32 %s347, 4
          %s357 = int_to_ptr.vmem [resolvable:$true] %s356
          %s358 = sshll.u32 %s355, 4
          %s359 = int_to_ptr.hbm [resolvable:$true] %s358
          %364 = dma.vmem_to_hbm [thread:$0]  %s357, 1024, %s359, %s344, 256, 256, 16
        $region40: #{tpu_custom_call.1} parent=31 // pred_fallthru
          _
      $region32: #{tpu_custom_call.1} parent=5 // pred_fallthru
        _
      %p365 = scmp.le.s32.totalorder 2, %s15
      // Predicated region
      $region41: #{tpu_custom_call.1} parent=5 // pred_check
        %p366 = pneg %p365
      $region42: #{tpu_custom_call.1} parent=5 // pred_check_branch
        %368 = sbr.rel (%p366) target = $region44
      $region43: #{tpu_custom_call.1} parent=5 // pred_region
        %s369 = ssub.s32 %s15, 2
        // Predicated region
        $region45: #{tpu_custom_call.1} parent=43 // pred_check
          %p370 = pneg %p112
        $region46: #{tpu_custom_call.1} parent=43 // pred_check_branch
          %372 = sbr.rel (%p370) target = $region48
        $region47: #{tpu_custom_call.1} parent=43 // pred_region
          %s373 = sand.u32 %s97, 1
          %s374 = scalar_lea.sflag [#allocation4], %s373
          %s375 = sand.u32 %s97, 1
          %s376 = smul.addr %s375, 64
          %s377 = scalar_lea.vmem [#allocation5], %s376
          %379 = dma.done %s374, 1024
        $region48: #{tpu_custom_call.1} parent=43 // pred_fallthru
          _
      $region44: #{tpu_custom_call.1} parent=5 // pred_fallthru
        _
    $region6: #{tpu_custom_call.1} parent=1 // loop_footer
      %s19 = sadd.s32 1, %s15
    $region7: #{tpu_custom_call.1} parent=1 // loop_footer_branch
      %14 = sbr.rel target = $region3
    $region8: #{tpu_custom_call.1} parent=1 // loop_exit
      _
    %380 = vsyncpa [#allocation3], 1
    %s381 = scalar_lea.sflag [#allocation3], 1
    %382 = vsyncpa %s381, 1
    %383 = vsyncpa [#allocation4], 1
    %s384 = scalar_lea.sflag [#allocation4], 1
    %385 = vsyncpa %s384, 1

</llo_original>
